<compile_context>
chip_gen: v5e
topology: v5e:2x2
jax: 0.10.0
libtpu: 0.0.40
codegen_flags: <defaults>
</compile_context>

<pallas_src>
import functools

import jax
import jax.numpy as jnp
from jax import lax
from jax.experimental import pallas as pl
from jax.experimental.pallas import tpu as pltpu

_LANES = 128


def _abs_pow(h, p):
    """|h|**p for a static python float p > 0 (any sign of h, zeros allowed)."""
    if p == 1.0:
        return jnp.abs(h)
    if p == 2.0:
        return h * h                        # single VPU multiply, no abs needed
    if float(p).is_integer():
        ip = int(p)
        if ip % 2 == 0:
            return lax.integer_pow(h, ip)   # even power: sign irrelevant
        return lax.integer_pow(jnp.abs(h), ip)
    return jnp.abs(h) ** p                  # generic: log+exp on the EUP


def _root(s, p):
    if p == 1.0:
        return s
    if p == 2.0:
        return jnp.sqrt(s)
    return s ** (1.0 / p)


def sob_loss_kernel(beta_ref, out_ref, carry_ref, acc_ref, *, p):
    """One (block_rows, 128) tile of the (un-rooted) Sobolev-norm reduction.

    beta_ref : VMEM (block_rows, 128)  -- current tile of beta (native dtype)
    out_ref  : VMEM (8, 128) f32       -- this core's partial sums (last step)
    carry_ref: VMEM (1, 1) f32 scratch -- last element of the previous tile
    acc_ref  : VMEM (8, 128) f32 scratch -- running partial sums
    """
    t = pl.program_id(1)                              # tile index within this core

    x = beta_ref[...].astype(jnp.float32)             # cast in-vreg (bf16 ok)
    rows, lanes = x.shape

    @pl.when(t == 0)
    def _init():
        acc_ref[...] = jnp.zeros_like(acc_ref)
        # Seed the carry with this chunk's own first element: the (0,0) "diff"
        # is then exactly zero and no validity mask is needed anywhere.
        carry_ref[...] = x[0:1, 0:1]

    prev_boundary = carry_ref[...]                    # (1,1): prev tile's last elem

    # Previous element in flat row-major order, built with XLU rotations only:
    #   x_lane[r, l] = x[r, l-1]     (wraps within the row at l == 0)
    #   x_wrap[r, 0] = x[r-1, 127]   (fixes the row wrap; x_wrap[0,0] = x[-1,-1])
    x_lane = pltpu.roll(x, shift=1, axis=1)
    x_wrap = pltpu.roll(x_lane, shift=1, axis=0)

    # Carry this tile's last element (== x_wrap[0,0], an aligned (1,1) slice)
    # to the next grid step.  (Read of the old carry happened above.)
    carry_ref[...] = x_wrap[0:1, 0:1]

    lane = lax.broadcasted_iota(jnp.int32, x.shape, 1)
    row = lax.broadcasted_iota(jnp.int32, x.shape, 0)
    prev = jnp.where(lane == 0,
                     jnp.where(row == 0, prev_boundary, x_wrap),
                     x_lane)
    terms = _abs_pow(x - prev, p)                     # (rows, 128) f32

    # Fold row-groups into a dense (8,128) partial-sum block (pure VPU adds);
    # the cross-lane reduce happens in the wrapper on the tiny output.
    acc_ref[...] += jnp.sum(terms.reshape(rows // 8, 8, lanes), axis=0)

    @pl.when(t == pl.num_programs(1) - 1)
    def _finalize():
        out_ref[...] = acc_ref[...]                   # lane-dense unmasked store


def sob_loss(beta, p, *, block_rows=None):
    """Pallas implementation of SobLoss(p).forward(beta) for 1-D beta."""
    p = float(p)
    n = int(beta.shape[0])
    if n < 2:
        return jnp.zeros((), jnp.float32)             # norm of an empty diff

    if block_rows is None:
        # Aim for ~8 tiles (>= 4 per core), capped at 2048 rows (1 MiB f32 per
        # input buffer): large enough to amortize the ~0.35us/step overhead,
        # small enough that the ~6x in-kernel temporaries fit v7x scoped VMEM.
        block_rows = min(2048, max(8, ((n // _LANES) // 8) // 8 * 8))
    block_rows = max(8, (int(block_rows) // 8) * 8)
    tile_elems = block_rows * _LANES
    num_tiles_total = n // tile_elems

    if num_tiles_total == 0:
        # Tiny input: a standalone pallas_call is launch-overhead dominated.
        h = (beta[1:] - beta[:-1]).astype(jnp.float32)
        return _root(jnp.sum(_abs_pow(h, p)), p)

    # Split whole tiles across 2 "cores" (real TCs on v7x, an outer loop of 2
    # elsewhere).  Any leftover tile joins the ragged tail below.
    num_cores = 2 if num_tiles_total >= 2 else 1
    tiles_per_core = num_tiles_total // num_cores
    num_tiles_used = num_cores * tiles_per_core
    n_main = num_tiles_used * tile_elems

    # Zero-copy view of the leading whole-tile part of beta (native dtype).
    beta2d = beta[:n_main].reshape(num_tiles_used * block_rows, _LANES)

    cost = pl.CostEstimate(
        flops=3 * n_main,
        transcendentals=0 if float(p).is_integer() else n_main,
        bytes_accessed=n_main * beta.dtype.itemsize + num_cores * 8 * _LANES * 4,
    )

    partial = pl.pallas_call(
        functools.partial(sob_loss_kernel, p=p),
        out_shape=jax.ShapeDtypeStruct((num_cores * 8, _LANES), jnp.float32),
        grid=(num_cores, tiles_per_core),
        in_specs=[pl.BlockSpec((block_rows, _LANES),
                               lambda c, t: (c * tiles_per_core + t, 0))],
        out_specs=pl.BlockSpec((8, _LANES), lambda c, t: (c, 0)),
        scratch_shapes=[pltpu.VMEM((1, 1), jnp.float32),      # boundary carry
                        pltpu.VMEM((8, _LANES), jnp.float32)],  # partial sums
        compiler_params=pltpu.CompilerParams(
            dimension_semantics=("parallel", "arbitrary"),
            vmem_limit_bytes=32 * 1024 * 1024),
        cost_estimate=cost,
    )(beta2d)

    total = jnp.sum(partial)

    # Diffs not covered by the kernel (all << one tile of work, fused XLA):
    #  (a) the single diff crossing the core split (each core seeds its carry
    #      with its own first element, so that diff is dropped in-kernel);
    #  (b) the ragged tail beta[n_main:] and the diff crossing into it.
    if num_cores == 2:
        b = tiles_per_core * tile_elems
        total = total + _abs_pow((beta[b] - beta[b - 1]).astype(jnp.float32), p)
    if n_main < n:
        tail = (beta[n_main:] - beta[n_main - 1:n - 1]).astype(jnp.float32)
        total = total + jnp.sum(_abs_pow(tail, p))

    return _root(total, p)


if __name__ == "__main__":
    key = jax.random.PRNGKey(0)
    N = 5000
    beta = jax.random.normal(key, (N,), dtype=jnp.float32)

    def ref_norm(b, p):
        hdiff = b[1:] - b[:-1]
        return jnp.sum(jnp.abs(hdiff) ** p) ** (1.0 / p)

    # Forced small tiles: tile_elems=1024 -> 4 tiles -> 2 cores x 2 tiles each,
    # plus a 904-element ragged tail.  Exercises the VMEM carry, the core-split
    # boundary term and the wrapper tail path.
    result = sob_loss(beta, 2.0, block_rows=8)
    jax.block_until_ready(result)
    ref = ref_norm(beta, 2.0)
    assert jnp.allclose(result, ref, rtol=1e-4, atol=1e-5), (float(result), float(ref))

    # Integer-p fast path and generic non-integer-p fallback.
    for pp in (3.0, 1.5):
        r = sob_loss(beta, pp, block_rows=8)
        jax.block_until_ready(r)
        rr = ref_norm(beta, pp)
        assert jnp.allclose(r, rr, rtol=1e-4, atol=1e-5), (pp, float(r), float(rr))

    # Exact tile-boundary size (no tail), one tile per core.
    N2 = 4096
    beta2 = jax.random.normal(jax.random.PRNGKey(0), (N2,), dtype=jnp.float32)
    r2 = sob_loss(beta2, 2.0, block_rows=16)
    jax.block_until_ready(r2)
    assert jnp.allclose(r2, ref_norm(beta2, 2.0), rtol=1e-4, atol=1e-5)

    # Default tiling at this small N takes the fused-XLA fallback; check it too.
    r3 = sob_loss(beta, 2.0)
    jax.block_until_ready(r3)
    assert jnp.allclose(r3, ref, rtol=1e-4, atol=1e-5)

    print("KERNEL_OK")
</pallas_src>

<mosaic_0001>
module attributes {stable_mosaic.version = 11 : i64} {
  func.func @sob_loss_kernel(%arg0: i32, %arg1: i32, %arg2: memref<8x128xf32, #tpu.memory_space<vmem>>, %arg3: memref<8x128xf32, #tpu.memory_space<vmem>>, %arg4: memref<1x1xf32, #tpu.memory_space<vmem>>, %arg5: memref<8x128xf32, #tpu.memory_space<vmem>>) attributes {dimension_semantics = [#tpu.dimension_semantics<parallel>, #tpu.dimension_semantics<arbitrary>], iteration_bounds = array<i64: 2, 2>, scalar_prefetch = 0 : i64, scratch_operands = 2 : i64, tpu.core_type = #tpu.core_type<tc>, window_params = [{transform_indices = @transform_0, window_bounds = array<i64: 8, 128>}, {transform_indices = @transform_1, window_bounds = array<i64: 8, 128>}]} {
    %c0 = arith.constant 0 : index
    %c0_0 = arith.constant 0 : index
    %0 = vector.load %arg2[%c0, %c0_0] : memref<8x128xf32, #tpu.memory_space<vmem>>, vector<8x128xf32>
    %c0_i32 = arith.constant 0 : i32
    %1 = arith.cmpi eq, %arg1, %c0_i32 : i32
    %2 = arith.extui %1 : i1 to i32
    %c0_i32_1 = arith.constant 0 : i32
    %3 = arith.cmpi ne, %2, %c0_i32_1 : i32
    scf.if %3 {
      %cst_15 = arith.constant 0.000000e+00 : f32
      %29 = vector.broadcast %cst_15 : f32 to vector<8x128xf32>
      %c0_16 = arith.constant 0 : index
      %c0_17 = arith.constant 0 : index
      %30 = vector.load %arg5[%c0_16, %c0_17] : memref<8x128xf32, #tpu.memory_space<vmem>>, vector<8x128xf32>
      tpu.vector_store %arg5[%c0_16, %c0_17], %29 {strides = array<i32>} : memref<8x128xf32, #tpu.memory_space<vmem>>, vector<8x128xf32>,
      %31 = vector.extract_strided_slice %0 {offsets = [0, 0], sizes = [1, 1], strides = [1, 1]} : vector<8x128xf32> to vector<1x1xf32>
      %c0_18 = arith.constant 0 : index
      %c0_19 = arith.constant 0 : index
      %32 = vector.load %arg4[%c0_18, %c0_19] : memref<1x1xf32, #tpu.memory_space<vmem>>, vector<1x1xf32>
      tpu.vector_store %arg4[%c0_18, %c0_19], %31 {strides = array<i32>} : memref<1x1xf32, #tpu.memory_space<vmem>>, vector<1x1xf32>,
    } else {
    }
    %c0_2 = arith.constant 0 : index
    %c0_3 = arith.constant 0 : index
    %4 = vector.load %arg4[%c0_2, %c0_3] : memref<1x1xf32, #tpu.memory_space<vmem>>, vector<1x1xf32>
    %c1_i32 = arith.constant 1 : i32
    %5 = tpu.dynamic_rotate %0 by %c1_i32 dim 1 : vector<8x128xf32>, i32 -> vector<8x128xf32>
    %c1_i32_4 = arith.constant 1 : i32
    %6 = tpu.dynamic_rotate %5 by %c1_i32_4 dim 0 : vector<8x128xf32>, i32 -> vector<8x128xf32>
    %7 = vector.extract_strided_slice %6 {offsets = [0, 0], sizes = [1, 1], strides = [1, 1]} : vector<8x128xf32> to vector<1x1xf32>
    %c0_5 = arith.constant 0 : index
    %c0_6 = arith.constant 0 : index
    %8 = vector.load %arg4[%c0_5, %c0_6] : memref<1x1xf32, #tpu.memory_space<vmem>>, vector<1x1xf32>
    tpu.vector_store %arg4[%c0_5, %c0_6], %7 {strides = array<i32>} : memref<1x1xf32, #tpu.memory_space<vmem>>, vector<1x1xf32>,
    %9 = tpu.iota {dimensions = array<i32: 1>} : vector<8x128xi32>
    %10 = tpu.iota {dimensions = array<i32: 0>} : vector<8x128xi32>
    %c0_i32_7 = arith.constant 0 : i32
    %11 = vector.broadcast %c0_i32_7 : i32 to vector<8x128xi32>
    %12 = arith.cmpi eq, %9, %11 : vector<8x128xi32>
    %c0_i32_8 = arith.constant 0 : i32
    %13 = vector.broadcast %c0_i32_8 : i32 to vector<8x128xi32>
    %14 = arith.cmpi eq, %10, %13 : vector<8x128xi32>
    %15 = vector.shape_cast %4 : vector<1x1xf32> to vector<1x1xf32>
    %16 = vector.broadcast %15 : vector<1x1xf32> to vector<8x128xf32>
    %17 = arith.select %14, %16, %6 : vector<8x128xi1>, vector<8x128xf32>
    %18 = arith.select %12, %17, %5 : vector<8x128xi1>, vector<8x128xf32>
    %19 = arith.subf %0, %18 : vector<8x128xf32>
    %20 = arith.mulf %19, %19 : vector<8x128xf32>
    %c0_9 = arith.constant 0 : index
    %c0_10 = arith.constant 0 : index
    %21 = vector.load %arg5[%c0_9, %c0_10] : memref<8x128xf32, #tpu.memory_space<vmem>>, vector<8x128xf32>
    %22 = vector.shape_cast %20 : vector<8x128xf32> to vector<1x8x128xf32>
    %cst = arith.constant dense<0.000000e+00> : vector<8x128xf32>
    %23 = vector.multi_reduction <add>, %22, %cst [0] : vector<1x8x128xf32> to vector<8x128xf32>
    %24 = arith.addf %21, %23 : vector<8x128xf32>
    %c0_11 = arith.constant 0 : index
    %c0_12 = arith.constant 0 : index
    %25 = vector.load %arg5[%c0_11, %c0_12] : memref<8x128xf32, #tpu.memory_space<vmem>>, vector<8x128xf32>
    tpu.vector_store %arg5[%c0_11, %c0_12], %24 {strides = array<i32>} : memref<8x128xf32, #tpu.memory_space<vmem>>, vector<8x128xf32>,
    %c1_i32_13 = arith.constant 1 : i32
    %26 = arith.cmpi eq, %arg1, %c1_i32_13 : i32
    %27 = arith.extui %26 : i1 to i32
    %c0_i32_14 = arith.constant 0 : i32
    %28 = arith.cmpi ne, %27, %c0_i32_14 : i32
    scf.if %28 {
      %c0_15 = arith.constant 0 : index
      %c0_16 = arith.constant 0 : index
      %29 = vector.load %arg5[%c0_15, %c0_16] : memref<8x128xf32, #tpu.memory_space<vmem>>, vector<8x128xf32>
      %c0_17 = arith.constant 0 : index
      %c0_18 = arith.constant 0 : index
      %30 = vector.load %arg3[%c0_17, %c0_18] : memref<8x128xf32, #tpu.memory_space<vmem>>, vector<8x128xf32>
      tpu.vector_store %arg3[%c0_17, %c0_18], %29 {strides = array<i32>} : memref<8x128xf32, #tpu.memory_space<vmem>>, vector<8x128xf32>,
    } else {
    }
    return
  }
  func.func @transform_0(%arg0: i32, %arg1: i32) -> (i32, i32) {
    %c2_i32 = arith.constant 2 : i32
    %0 = arith.muli %arg0, %c2_i32 : i32
    %1 = arith.addi %0, %arg1 : i32
    %c0_i32 = arith.constant 0 : i32
    %c0_i32_0 = arith.constant 0 : i32
    return %1, %c0_i32 : i32, i32
  }
  func.func @transform_1(%arg0: i32, %arg1: i32) -> (i32, i32) {
    %c0_i32 = arith.constant 0 : i32
    %c0_i32_0 = arith.constant 0 : i32
    return %arg0, %c0_i32 : i32, i32
  }
}

</mosaic_0001>

<llo_original>
// kernel: tpu_custom_call.1
$region0: #{tpu_custom_call.1}
  #allocation0 [shape = 'u32[]', space=smem, size = 0x4, offset = 0x4, fixed_abs, tag = 'smem constant byte address 0x4 - core index']
  #allocation1 [shape = 'u32[72,128]{1,0:T(1,128)}', space=vmem, size = 0x9000, scoped, tag = 'internal scratch']
  #allocation2 [shape = 'f32[1,1]{1,0:T(1,128)}', space=vmem, size = 0x200, scoped, tag = 'scratch operand']
  #allocation3 [shape = 'f32[8,128]{1,0:T(8,128)}', space=vmem, size = 0x1000, scoped, tag = 'scratch operand']
  %s0 = inlined_call_operand.hbm [shape: f32[32,128], index: 0, kind: input, shape index: {}]
  %s1 = inlined_call_operand.hbm [shape: f32[16,128], index: 1, kind: output, shape index: {}]
  %s2 = sld [smem:[#allocation0]]
  $region49: #{tpu_custom_call.1} parent=0
    _
  %s4 = ssub.s32 1, %s2
  %s5 = scalar_select 0, %s4, %s2
  $region1: #{tpu_custom_call.1} parent=0
    #allocation4 [shape = 'u8[8192]{0}', space=vmem, size = 0x2000, scoped, tag = 'input window, operand 0']
    #allocation5 [shape = 's32[2]{0}', space=sflag, size = 0x8, scoped, tag = 'scoped memory for tpu_custom_call.1']
    #allocation6 [shape = 's32[2]{0}', space=sflag, size = 0x8, scoped, tag = 'scoped memory for tpu_custom_call.1']
    #allocation7 [shape = 'u8[8192]{0}', space=vmem, size = 0x2000, scoped, tag = 'output window, operand 0']
    %6 = vsyncpa [#allocation5], 0
    %s7 = scalar_lea.sflag [#allocation5], 1
    %8 = vsyncpa %s7, 0
    %9 = vsyncpa [#allocation6], 0
    %s10 = scalar_lea.sflag [#allocation6], 1
    %11 = vsyncpa %s10, 0
    loop: start=0, step=1, limit=6
    $region2: #{tpu_custom_call.1} parent=1 // loop_pre_header
      _
    $region3: #{tpu_custom_call.1} parent=1 // loop_header
      %s13 = sphi 0, %s17
      %p14 = scmp.ge.s32.totalorder %s13, 6
      %s20 = sphi 0, %s32
      %s21 = sphi 0, %s28
      %s22 = sphi 0, %s20
      %s23 = sphi 0, %s21
      %s24 = sphi 0, %s22
      %s25 = sphi 0, %s23
      %s39 = sphi 0, %s41
      %s42 = sphi 0, %s39
      %s43 = sphi 0, %s42
      %s59 = sphi 0, %s43
      %s65 = sphi 0, %s67
      %s68 = sphi 0, %s65
      %s69 = sphi 0, %s68
      %s85 = sphi 0, %s69
    $region4: #{tpu_custom_call.1} parent=1 // loop_header_branch
      %16 = sbr.rel (%p14) target = $region8
    $region5: #{tpu_custom_call.1} parent=1 // loop_body
      %s18 = ssub.s32 %s13, 1
      %s19 = ssub.s32 %s13, 2
      %s26 = sadd.s32 1, %s21
      %p27 = scmp.ge.s32.totalorder %s26, 2
      %s28 = scalar_select %p27, 0, %s26
      %s29 = sadd.s32 1, %s20
      %s30 = scalar_select %p27, %s29, %s20
      %p31 = scmp.ge.s32.totalorder %s30, 2
      %s32 = scalar_select %p31, 0, %s30
      %s33 = smul.u32 %s20, 2
      %s34 = sadd.s32 %s33, %s21
      %s35 = smul.u32 %s32, 2
      %s36 = sadd.s32 %s35, %s28
      %s37 = ssub.s32 %s34, %s36
      %p38 = scmp.eq.s32.totalorder %s37, 0
      %s40 = sadd.s32 %s39, 1
      %s41 = scalar_select %p38, %s39, %s40
      %p44 = pneg %p38
      %p45 = scmp.eq.s32.totalorder %s13, 3
      %p46 = por %p44, %p45
      %p47 = scmp.ne.s32.totalorder %s39, %s42
      %p48 = scmp.eq.s32.totalorder %s13, 0
      %p49 = por %p47, %p48
      %p50 = scmp.ne.s32.totalorder %s39, %s42
      %p51 = scmp.eq.s32.totalorder %s18, 3
      %p52 = por %p50, %p51
      %p53 = scmp.ne.s32.totalorder %s42, %s43
      %p54 = scmp.eq.s32.totalorder %s18, 0
      %p55 = por %p53, %p54
      %p56 = scmp.ne.s32.totalorder %s42, %s43
      %p57 = scmp.eq.s32.totalorder %s19, 3
      %p58 = por %p56, %p57
      %p60 = scmp.ne.s32.totalorder %s43, %s59
      %p61 = scmp.eq.s32.totalorder %s19, 0
      %p62 = por %p60, %p61
      %s63 = ssub.s32 %s20, %s32
      %p64 = scmp.eq.s32.totalorder %s63, 0
      %s66 = sadd.s32 %s65, 1
      %s67 = scalar_select %p64, %s65, %s66
      %p70 = pneg %p64
      %p71 = scmp.eq.s32.totalorder %s13, 3
      %p72 = por %p70, %p71
      %p73 = scmp.ne.s32.totalorder %s65, %s68
      %p74 = scmp.eq.s32.totalorder %s13, 0
      %p75 = por %p73, %p74
      %p76 = scmp.ne.s32.totalorder %s65, %s68
      %p77 = scmp.eq.s32.totalorder %s18, 3
      %p78 = por %p76, %p77
      %p79 = scmp.ne.s32.totalorder %s68, %s69
      %p80 = scmp.eq.s32.totalorder %s18, 0
      %p81 = por %p79, %p80
      %p82 = scmp.ne.s32.totalorder %s68, %s69
      %p83 = scmp.eq.s32.totalorder %s19, 3
      %p84 = por %p82, %p83
      %p86 = scmp.ne.s32.totalorder %s69, %s85
      %p87 = scmp.eq.s32.totalorder %s19, 0
      %p88 = por %p86, %p87
      %p89 = scmp.le.s32.totalorder 1, %s13
      %p90 = scmp.lt.s32.totalorder %s13, 5
      %p91 = pnand %p89, %p90
      %p92 = pneg %p91
      // Predicated region
      $region9: #{tpu_custom_call.1} parent=5 // pred_check
        _
      $region10: #{tpu_custom_call.1} parent=5 // pred_check_branch
        %94 = sbr.rel (%p91) target = $region12
      $region11: #{tpu_custom_call.1} parent=5 // pred_region
        %s95 = ssub.s32 %s13, 1
      $region12: #{tpu_custom_call.1} parent=5 // pred_fallthru
        _
      %p96 = scmp.lt.s32.totalorder %s13, 4
      // Predicated region
      $region13: #{tpu_custom_call.1} parent=5 // pred_check
        %p97 = pneg %p96
      $region14: #{tpu_custom_call.1} parent=5 // pred_check_branch
        %99 = sbr.rel (%p97) target = $region16
      $region15: #{tpu_custom_call.1} parent=5 // pred_region
        // Predicated region
        $region17: #{tpu_custom_call.1} parent=15 // pred_check
          %p100 = pneg %p49
        $region18: #{tpu_custom_call.1} parent=15 // pred_check_branch
          %102 = sbr.rel (%p100) target = $region20
        $region19: #{tpu_custom_call.1} parent=15 // pred_region
          %s103 = sand.u32 %s39, 1
          %s104 = scalar_lea.sflag [#allocation5], %s103
          %s105 = sand.u32 %s39, 1
          %s106 = smul.addr %s105, 8
          %s107 = scalar_lea.vmem [#allocation4], %s106
          %s108 = smul.u32 %s20, 2
          %s109 = sadd.s32 %s108, %s21
          %111 = vsyncadd %s104, 0
          %s112 = smul.addr %s109, 8
          %s113 = scalar_lea.hbm %s0, %s112
          %s115 = sshll.u32 %s113, 4
          %s116 = int_to_ptr.hbm [resolvable:$true] %s115
          %s117 = sshll.u32 %s107, 4
          %s118 = int_to_ptr.vmem [resolvable:$true] %s117
          %120 = dma.hbm_to_vmem [thread:$0]  %s116, 128, %s118, %s104
        $region20: #{tpu_custom_call.1} parent=15 // pred_fallthru
          _
      $region16: #{tpu_custom_call.1} parent=5 // pred_fallthru
        _
      %p121 = scmp.le.s32.totalorder 1, %s13
      %p122 = scmp.lt.s32.totalorder %s13, 5
      %p123 = pnand %p121, %p122
      %p124 = pneg %p123
      // Predicated region
      $region21: #{tpu_custom_call.1} parent=5 // pred_check
        _
      $region22: #{tpu_custom_call.1} parent=5 // pred_check_branch
        %126 = sbr.rel (%p123) target = $region24
      $region23: #{tpu_custom_call.1} parent=5 // pred_region
        %s127 = ssub.s32 %s13, 1
        %s128 = sand.u32 %s42, 1
        %s129 = scalar_lea.sflag [#allocation5], %s128
        %s130 = sand.u32 %s42, 1
        %s131 = smul.addr %s130, 8
        %s132 = scalar_lea.vmem [#allocation4], %s131
        // Predicated region
        $region25: #{tpu_custom_call.1} parent=23 // pred_check
          %p133 = pneg %p55
        $region26: #{tpu_custom_call.1} parent=23 // pred_check_branch
          %135 = sbr.rel (%p133) target = $region28
        $region27: #{tpu_custom_call.1} parent=23 // pred_region
          %137 = dma.done %s129, 128
        $region28: #{tpu_custom_call.1} parent=23 // pred_fallthru
          _
        %s138 = sand.u32 %s42, 1
        %s139 = scalar_lea.sflag [#allocation5], %s138
        %s140 = sand.u32 %s42, 1
        %s141 = smul.addr %s140, 8
        %s142 = scalar_lea.vmem [#allocation4], %s141
        %p143 = pneg %p55
        %p144 = pneg %p52
        %p145 = pneg %p81
        %p146 = pneg %p78
        %s147 = sand.u32 %s68, 1
        %s148 = scalar_lea.sflag [#allocation6], %s147
        %s149 = sand.u32 %s68, 1
        %s150 = smul.addr %s149, 8
        %s151 = scalar_lea.vmem [#allocation7], %s150
        %s152 = smul.u32 %s22, 2
        %s153 = sadd.s32 %s152, %s23
        %v154 = vld [vmem:[%s132] sm:$0xff]
        %p155 = scmp.eq.s32.totalorder %s23, 0
        // Predicated region
        $region29: #{tpu_custom_call.1} parent=23 // pred_check
          %p156 = pneg %p155
        $region30: #{tpu_custom_call.1} parent=23 // pred_check_branch
          %158 = sbr.rel (%p156) target = $region32
        $region31: #{tpu_custom_call.1} parent=23 // pred_region
          %159 = vst [vmem:[#allocation3] sm:$0xff] 0.0
          %vm160 = vcmask 0
          %161 = vst.msk [vmem:[#allocation2] sm:$0x1] %vm160, %v154
        $region32: #{tpu_custom_call.1} parent=23 // pred_fallthru
          _
        %v162 = vld [vmem:[#allocation2] sm:$0x1]
        %163 = vrot.lane.b32.xlu0 %v154, 1
        %v164 = vpop.permute.xlu0 %163
        %v165 = vrot.slane %v164, 7
        %vm166 = vcmask 0
        %167 = vst.msk [vmem:[#allocation2] sm:$0x1] %vm166, %v165
        %v168 = vlaneseq
        %v169 = vand.u32 %v168, 127
        %v170 = vlaneseq
        %v171 = vshrl.u32 %v170, 7
        %vm172 = vcmp.eq.s32.totalorder %v169, 0
        %vm173 = vcmp.eq.s32.totalorder %v171, 0
        %v175 = vperm.slane %v162, 0
        %176 = vset.pattern.permute.xlu0 0
        %177 = vperm.xlu0 %176, %v175
        %v178 = vpop.permute.xlu0 %177
        %v180 = vsel %vm173, %v178, %v165
        %v181 = vsel %vm172, %v180, %v164
        %v182 = vsub.f32 %v154, %v181
        %v183 = vmul.f32 %v182, %v182
        %v184 = vld [vmem:[#allocation3] sm:$0xff]
        %v185 = vadd.f32 %v183, 0.0
        %v186 = vadd.f32 %v184, %v185
        %187 = vst [vmem:[#allocation3] sm:$0xff] %v186
        %p188 = scmp.eq.s32.totalorder %s23, 1
        // Predicated region
        $region33: #{tpu_custom_call.1} parent=23 // pred_check
          %p189 = pneg %p188
        $region34: #{tpu_custom_call.1} parent=23 // pred_check_branch
          %191 = sbr.rel (%p189) target = $region36
        $region35: #{tpu_custom_call.1} parent=23 // pred_region
          %v192 = vld [vmem:[#allocation3] sm:$0xff]
          %193 = vst [vmem:[%s151] sm:$0xff] %v192
        $region36: #{tpu_custom_call.1} parent=23 // pred_fallthru
          _
        %s194 = sand.u32 %s68, 1
        %s195 = scalar_lea.sflag [#allocation6], %s194
        %s196 = sand.u32 %s68, 1
        %s197 = smul.addr %s196, 8
        %s198 = scalar_lea.vmem [#allocation7], %s197
        // Predicated region
        $region37: #{tpu_custom_call.1} parent=23 // pred_check
          %p199 = pneg %p78
        $region38: #{tpu_custom_call.1} parent=23 // pred_check_branch
          %201 = sbr.rel (%p199) target = $region40
        $region39: #{tpu_custom_call.1} parent=23 // pred_region
          %203 = vsyncadd %s195, 0
          %s204 = smul.addr %s22, 8
          %s205 = scalar_lea.hbm %s1, %s204
          %s207 = sshll.u32 %s198, 4
          %s208 = int_to_ptr.vmem [resolvable:$true] %s207
          %s209 = sshll.u32 %s205, 4
          %s210 = int_to_ptr.hbm [resolvable:$true] %s209
          %212 = dma.vmem_to_hbm [thread:$0]  %s208, 128, %s210, %s195
        $region40: #{tpu_custom_call.1} parent=23 // pred_fallthru
          _
      $region24: #{tpu_custom_call.1} parent=5 // pred_fallthru
        _
      %p213 = scmp.le.s32.totalorder 2, %s13
      // Predicated region
      $region41: #{tpu_custom_call.1} parent=5 // pred_check
        %p214 = pneg %p213
      $region42: #{tpu_custom_call.1} parent=5 // pred_check_branch
        %216 = sbr.rel (%p214) target = $region44
      $region43: #{tpu_custom_call.1} parent=5 // pred_region
        %s217 = ssub.s32 %s13, 2
        // Predicated region
        $region45: #{tpu_custom_call.1} parent=43 // pred_check
          %p218 = pneg %p84
        $region46: #{tpu_custom_call.1} parent=43 // pred_check_branch
          %220 = sbr.rel (%p218) target = $region48
        $region47: #{tpu_custom_call.1} parent=43 // pred_region
          %s221 = sand.u32 %s69, 1
          %s222 = scalar_lea.sflag [#allocation6], %s221
          %s223 = sand.u32 %s69, 1
          %s224 = smul.addr %s223, 8
          %s225 = scalar_lea.vmem [#allocation7], %s224
          %227 = dma.done %s222, 128
        $region48: #{tpu_custom_call.1} parent=43 // pred_fallthru
          _
      $region44: #{tpu_custom_call.1} parent=5 // pred_fallthru
        _
    $region6: #{tpu_custom_call.1} parent=1 // loop_footer
      %s17 = sadd.s32 1, %s13
    $region7: #{tpu_custom_call.1} parent=1 // loop_footer_branch
      %12 = sbr.rel target = $region3
    $region8: #{tpu_custom_call.1} parent=1 // loop_exit
      _
    %228 = vsyncpa [#allocation5], 1
    %s229 = scalar_lea.sflag [#allocation5], 1
    %230 = vsyncpa %s229, 1
    %231 = vsyncpa [#allocation6], 1
    %s232 = scalar_lea.sflag [#allocation6], 1
    %233 = vsyncpa %s232, 1

</llo_original>
